<compile_context>
chip_gen: v5e
topology: v5e:2x2
jax: 0.10.0
libtpu: 0.0.40
codegen_flags: <defaults>
</compile_context>

<pallas_src>
import functools

import jax
import jax.numpy as jnp
from jax.experimental import pallas as pl
from jax.experimental.pallas import tpu as pltpu


def _round_up(n, m):
    return ((n + m - 1) // m) * m


def _rvflnn_kernel(n_hid, x_ref, win_ref, w2h_ref, b1_ref, b2_ref, y_ref):
    # Cast (no-op for f32, VPU-hidden for bf16) right before the MXU op.
    x = x_ref[...].astype(win_ref.dtype)                                   # (TB, n_input)
    # Single MXU pass for both x-contractions:
    #   fused[:, :n_hid] = x @ W1.T      (hidden pre-activation)
    #   fused[:, n_hid:] = x @ W2_x.T    (direct-link contribution)
    fused = jnp.dot(x, win_ref[...], preferred_element_type=jnp.float32)   # (TB, n_hid+n_out)
    h = jnp.maximum(fused[:, :n_hid] + b1_ref[...], 0.0)                   # f32 bias/ReLU on VPU
    y = (jnp.dot(h.astype(w2h_ref.dtype), w2h_ref[...],
                 preferred_element_type=jnp.float32)
         + fused[:, n_hid:] + b2_ref[...])
    y_ref[...] = y.astype(y_ref.dtype)


def prepare_params(w1, b1, w2, b2, n_hid, *, use_bf16=False):
    """One-time parameter layout prep (hoisted off the per-call path).

    w1: (n_hid, n_input), b1: (n_hid,)                -- PyTorch Linear layout
    w2: (n_output, n_hid + n_input), b2: (n_output,)

    use_bf16: bf16 MXU operands (f32 accumulation / bias / ReLU).  Only worth it if x
    itself arrives in bf16 (halves the dominant HBM read); the kernel is not MXU bound,
    and the bf16 path will not match the f32 reference to 1e-5.
    """
    n_input = w1.shape[1]
    n_output = w2.shape[0]
    w_dtype = jnp.bfloat16 if use_bf16 else jnp.float32

    w1_t = w1.T                     # (n_input, n_hid)
    w2h_t = w2[:, :n_hid].T         # (n_hid, n_output)   -- acts on h
    w2x_t = w2[:, n_hid:].T         # (n_input, n_output) -- direct link, acts on x
    w_in = jnp.concatenate([w1_t, w2x_t], axis=1).astype(w_dtype)   # (n_input, n_hid+n_out)

    return {
        "w_in": w_in,
        "w2h": w2h_t.astype(w_dtype),
        "b1": b1.reshape(1, n_hid).astype(jnp.float32),
        "b2": b2.reshape(1, n_output).astype(jnp.float32),
        "n_hid": int(n_hid),
        "use_bf16": bool(use_bf16),
    }


def rvflnn_forward(x, params, *, block_b=2048, vmem_limit_bytes=None):
    """x: (B, n_input).  params: output of prepare_params().

    block_b: max batch tile.  2048 keeps live VMEM ~8 MiB (safe vs v5e's 16 MiB scoped
    default and v7x's 32 MiB); go to 4096 on v6e / with vmem_limit_bytes raised.
    """
    B, n_input = x.shape
    n_hid = params["n_hid"]
    n_output = params["w2h"].shape[1]

    # Sublane alignment for the batch tile: 16 for bf16 MXU operands, 8 for f32.
    align = 16 if params["use_bf16"] else 8

    # Big tiles amortize per-step overhead (mem-bound kernel), but keep >=2 grid steps
    # for large B so the "parallel" batch axis shards across 2 TensorCores on v7x.
    half_b = _round_up(pl.cdiv(B, 2), align)
    tb = max(align, min(block_b, half_b, _round_up(B, align)))
    grid = (pl.cdiv(B, tb),)   # partial last block handled by Pallas (no jnp.pad)

    kernel = functools.partial(_rvflnn_kernel, n_hid)

    w_bytes = (params["w_in"].size * params["w_in"].dtype.itemsize
               + params["w2h"].size * params["w2h"].dtype.itemsize
               + params["b1"].size * 4 + params["b2"].size * 4)
    cost = pl.CostEstimate(
        flops=2 * B * n_input * (n_hid + n_output) + 2 * B * n_hid * n_output,
        transcendentals=0,
        bytes_accessed=B * n_input * x.dtype.itemsize + B * n_output * 4 + w_bytes,
    )

    cp_kwargs = dict(dimension_semantics=("parallel",))
    if vmem_limit_bytes is not None:
        cp_kwargs["vmem_limit_bytes"] = vmem_limit_bytes

    y = pl.pallas_call(
        kernel,
        out_shape=jax.ShapeDtypeStruct((B, n_output), jnp.float32),
        grid=grid,
        in_specs=[
            pl.BlockSpec((tb, n_input), lambda i: (i, 0)),                 # x: tiled on batch
            pl.BlockSpec((n_input, n_hid + n_output), lambda i: (0, 0)),   # fused input weights
            pl.BlockSpec((n_hid, n_output), lambda i: (0, 0)),             # hidden->out weights
            pl.BlockSpec((1, n_hid), lambda i: (0, 0)),                    # b1
            pl.BlockSpec((1, n_output), lambda i: (0, 0)),                 # b2
        ],
        out_specs=pl.BlockSpec((tb, n_output), lambda i: (i, 0)),
        compiler_params=pltpu.CompilerParams(**cp_kwargs),
        cost_estimate=cost,
    )(x, params["w_in"], params["w2h"], params["b1"], params["b2"])

    return y


if __name__ == "__main__":
    # Model dims (direct_link=True): n_input=32, n_hid=128, n_output=4, batch=8
    B, n_input, n_hid, n_output = 8, 32, 128, 4

    key = jax.random.PRNGKey(0)
    kx, kw1, kb1, kw2, kb2, kx2 = jax.random.split(key, 6)

    x = jax.random.normal(kx, (B, n_input), dtype=jnp.float32)

    # Deterministic parameter init (PyTorch Linear-style uniform bounds).
    bound1 = 1.0 / jnp.sqrt(n_input)
    w1 = jax.random.uniform(kw1, (n_hid, n_input), jnp.float32, -bound1, bound1)
    b1 = jax.random.uniform(kb1, (n_hid,), jnp.float32, -bound1, bound1)
    bound2 = 1.0 / jnp.sqrt(n_hid + n_input)
    w2 = jax.random.uniform(kw2, (n_output, n_hid + n_input), jnp.float32, -bound2, bound2)
    b2 = jax.random.uniform(kb2, (n_output,), jnp.float32, -bound2, bound2)

    # One-time weight prep (hoisted off the per-call path).
    params = prepare_params(w1, b1, w2, b2, n_hid)

    def reference(xin):
        h = jnp.maximum(xin @ w1.T + b1, 0.0)
        return jnp.concatenate([h, xin], axis=1) @ w2.T + b2

    # Small-batch check (single grid step, matches the original module's typical usage).
    y = jax.block_until_ready(rvflnn_forward(x, params))
    assert y.shape == (B, n_output)
    assert jnp.allclose(y, reference(x), atol=1e-5, rtol=1e-5), "mismatch vs reference (B=8)"

    # Larger, non-multiple-of-tile batch: exercises the 2-step grid + partial last block
    # (no jnp.pad) path.
    B2 = 300
    x2 = jax.random.normal(kx2, (B2, n_input), dtype=jnp.float32)
    y2 = jax.block_until_ready(rvflnn_forward(x2, params))
    assert y2.shape == (B2, n_output)
    assert jnp.allclose(y2, reference(x2), atol=1e-4, rtol=1e-4), "mismatch vs reference (B=300)"

    print("KERNEL_OK")
</pallas_src>

<mosaic_0001>
module attributes {stable_mosaic.version = 11 : i64} {
  func.func @_rvflnn_kernel(%arg0: i32, %arg1: memref<8x32xf32, #tpu.memory_space<vmem>>, %arg2: memref<32x132xf32, #tpu.memory_space<vmem>>, %arg3: memref<128x4xf32, #tpu.memory_space<vmem>>, %arg4: memref<1x128xf32, #tpu.memory_space<vmem>>, %arg5: memref<1x4xf32, #tpu.memory_space<vmem>>, %arg6: memref<8x4xf32, #tpu.memory_space<vmem>>) attributes {dimension_semantics = [#tpu.dimension_semantics<parallel>], iteration_bounds = array<i64: 1>, scalar_prefetch = 0 : i64, scratch_operands = 0 : i64, tpu.core_type = #tpu.core_type<tc>, window_params = [{transform_indices = @transform_0, window_bounds = array<i64: 8, 32>}, {pipeline_mode = #tpu.pipeline_mode<synchronous>, transform_indices = @transform_1, window_bounds = array<i64: 32, 132>}, {pipeline_mode = #tpu.pipeline_mode<synchronous>, transform_indices = @transform_2, window_bounds = array<i64: 128, 4>}, {pipeline_mode = #tpu.pipeline_mode<synchronous>, transform_indices = @transform_3, window_bounds = array<i64: 1, 128>}, {pipeline_mode = #tpu.pipeline_mode<synchronous>, transform_indices = @transform_4, window_bounds = array<i64: 1, 4>}, {transform_indices = @transform_5, window_bounds = array<i64: 8, 4>}]} {
    %c0 = arith.constant 0 : index
    %c0_0 = arith.constant 0 : index
    %0 = vector.load %arg1[%c0, %c0_0] : memref<8x32xf32, #tpu.memory_space<vmem>>, vector<8x32xf32>
    %c0_1 = arith.constant 0 : index
    %c0_2 = arith.constant 0 : index
    %1 = vector.load %arg2[%c0_1, %c0_2] : memref<32x132xf32, #tpu.memory_space<vmem>>, vector<32x132xf32>
    %cst = arith.constant dense<0.000000e+00> : vector<8x132xf32>
    %2 = tpu.matmul %0, %1, %cst {dimension_numbers = #tpu.dot_dimension_numbers<[1], [0], [0], [1], [0, 0, 1, 1], [], []>} : vector<8x32xf32>, vector<32x132xf32>, vector<8x132xf32> -> vector<8x132xf32>
    %3 = vector.extract_strided_slice %2 {offsets = [0, 0], sizes = [8, 128], strides = [1, 1]} : vector<8x132xf32> to vector<8x128xf32>
    %c0_3 = arith.constant 0 : index
    %c0_4 = arith.constant 0 : index
    %4 = vector.load %arg4[%c0_3, %c0_4] : memref<1x128xf32, #tpu.memory_space<vmem>>, vector<1x128xf32>
    %5 = vector.broadcast %4 : vector<1x128xf32> to vector<8x128xf32>
    %6 = arith.addf %3, %5 : vector<8x128xf32>
    %cst_5 = arith.constant 0.000000e+00 : f32
    %7 = vector.broadcast %cst_5 : f32 to vector<8x128xf32>
    %8 = arith.maximumf %6, %7 : vector<8x128xf32>
    %c0_6 = arith.constant 0 : index
    %c0_7 = arith.constant 0 : index
    %9 = vector.load %arg3[%c0_6, %c0_7] : memref<128x4xf32, #tpu.memory_space<vmem>>, vector<128x4xf32>
    %cst_8 = arith.constant dense<0.000000e+00> : vector<8x4xf32>
    %10 = tpu.matmul %8, %9, %cst_8 {dimension_numbers = #tpu.dot_dimension_numbers<[1], [0], [0], [1], [0, 0, 1, 1], [], []>} : vector<8x128xf32>, vector<128x4xf32>, vector<8x4xf32> -> vector<8x4xf32>
    %11 = vector.extract_strided_slice %2 {offsets = [0, 128], sizes = [8, 4], strides = [1, 1]} : vector<8x132xf32> to vector<8x4xf32>
    %12 = arith.addf %10, %11 : vector<8x4xf32>
    %c0_9 = arith.constant 0 : index
    %c0_10 = arith.constant 0 : index
    %13 = vector.load %arg5[%c0_9, %c0_10] : memref<1x4xf32, #tpu.memory_space<vmem>>, vector<1x4xf32>
    %14 = vector.broadcast %13 : vector<1x4xf32> to vector<8x4xf32>
    %15 = arith.addf %12, %14 : vector<8x4xf32>
    %c0_11 = arith.constant 0 : index
    %c0_12 = arith.constant 0 : index
    %16 = vector.load %arg6[%c0_11, %c0_12] : memref<8x4xf32, #tpu.memory_space<vmem>>, vector<8x4xf32>
    tpu.vector_store %arg6[%c0_11, %c0_12], %15 {strides = array<i32>} : memref<8x4xf32, #tpu.memory_space<vmem>>, vector<8x4xf32>,
    return
  }
  func.func @transform_0(%arg0: i32) -> (i32, i32) {
    %c0_i32 = arith.constant 0 : i32
    %c0_i32_0 = arith.constant 0 : i32
    return %arg0, %c0_i32 : i32, i32
  }
  func.func @transform_1(%arg0: i32) -> (i32, i32) {
    %c0_i32 = arith.constant 0 : i32
    %c0_i32_0 = arith.constant 0 : i32
    %c0_i32_1 = arith.constant 0 : i32
    return %c0_i32, %c0_i32_0 : i32, i32
  }
  func.func @transform_2(%arg0: i32) -> (i32, i32) {
    %c0_i32 = arith.constant 0 : i32
    %c0_i32_0 = arith.constant 0 : i32
    %c0_i32_1 = arith.constant 0 : i32
    return %c0_i32, %c0_i32_0 : i32, i32
  }
  func.func @transform_3(%arg0: i32) -> (i32, i32) {
    %c0_i32 = arith.constant 0 : i32
    %c0_i32_0 = arith.constant 0 : i32
    %c0_i32_1 = arith.constant 0 : i32
    return %c0_i32, %c0_i32_0 : i32, i32
  }
  func.func @transform_4(%arg0: i32) -> (i32, i32) {
    %c0_i32 = arith.constant 0 : i32
    %c0_i32_0 = arith.constant 0 : i32
    %c0_i32_1 = arith.constant 0 : i32
    return %c0_i32, %c0_i32_0 : i32, i32
  }
  func.func @transform_5(%arg0: i32) -> (i32, i32) {
    %c0_i32 = arith.constant 0 : i32
    %c0_i32_0 = arith.constant 0 : i32
    return %arg0, %c0_i32 : i32, i32
  }
}

</mosaic_0001>

<llo_original>
// kernel: tpu_custom_call.1
$region0: #{tpu_custom_call.1}
  #allocation0 [shape = 'u32[]', space=smem, size = 0x4, offset = 0x4, fixed_abs, tag = 'smem constant byte address 0x4 - core index']
  #allocation1 [shape = 'u32[72,128]{1,0:T(1,128)}', space=vmem, size = 0x9000, scoped, tag = 'internal scratch']
  %s0 = inlined_call_operand.vmem [shape: f32[8,32], index: 0, kind: input, shape index: {}]
  %s1 = inlined_call_operand.vmem [shape: f32[32,132], index: 1, kind: input, shape index: {}]
  %s2 = inlined_call_operand.vmem [shape: f32[128,4], index: 2, kind: input, shape index: {}]
  %s3 = inlined_call_operand.vmem [shape: f32[1,128], index: 3, kind: input, shape index: {}]
  %s4 = inlined_call_operand.vmem [shape: f32[1,4], index: 4, kind: input, shape index: {}]
  %s5 = inlined_call_operand.vmem [shape: f32[8,4], index: 5, kind: output, shape index: {}]
  %s6 = sld [smem:[#allocation0]]
  $region30: #{tpu_custom_call.1} parent=0
    _
  %s8 = ssub.s32 1, %s6
  %s9 = scalar_select 0, %s8, %s6
  // Predicated region
  $region2: #{tpu_custom_call.1} parent=0 // pred_check
    _
  $region3: #{tpu_custom_call.1} parent=0 // pred_check_branch
    %11 = sbr.rel (0) target = $region5
  $region4: #{tpu_custom_call.1} parent=0 // pred_region
    _
  $region5: #{tpu_custom_call.1} parent=0 // pred_fallthru
    _
  // Predicated region
  $region6: #{tpu_custom_call.1} parent=0 // pred_check
    _
  $region7: #{tpu_custom_call.1} parent=0 // pred_check_branch
    %13 = sbr.rel (0) target = $region9
  $region8: #{tpu_custom_call.1} parent=0 // pred_region
    _
  $region9: #{tpu_custom_call.1} parent=0 // pred_fallthru
    _
  // Predicated region
  $region10: #{tpu_custom_call.1} parent=0 // pred_check
    _
  $region11: #{tpu_custom_call.1} parent=0 // pred_check_branch
    %15 = sbr.rel (0) target = $region13
  $region12: #{tpu_custom_call.1} parent=0 // pred_region
    _
  $region13: #{tpu_custom_call.1} parent=0 // pred_fallthru
    _
  // Predicated region
  $region14: #{tpu_custom_call.1} parent=0 // pred_check
    _
  $region15: #{tpu_custom_call.1} parent=0 // pred_check_branch
    %17 = sbr.rel (0) target = $region17
  $region16: #{tpu_custom_call.1} parent=0 // pred_region
    _
  $region17: #{tpu_custom_call.1} parent=0 // pred_fallthru
    _
  // Predicated region
  $region18: #{tpu_custom_call.1} parent=0 // pred_check
    _
  $region19: #{tpu_custom_call.1} parent=0 // pred_check_branch
    %19 = sbr.rel (0) target = $region21
  $region20: #{tpu_custom_call.1} parent=0 // pred_region
    _
  $region21: #{tpu_custom_call.1} parent=0 // pred_fallthru
    _
  %v20 = vld [vmem:[%s0] sm:$0xff]
  %v21 = vld [vmem:[%s1] sm:$0xff]
  %v22 = vld [vmem:[%s1 + $0x8] sm:$0xff]
  %v23 = vld [vmem:[%s1 + $0x10] sm:$0xff]
  %v24 = vld [vmem:[%s1 + $0x18] sm:$0xff]
  %v25 = vld [vmem:[%s1 + $0x20] sm:$0xff]
  %v26 = vld [vmem:[%s1 + $0x28] sm:$0xff]
  %v27 = vld [vmem:[%s1 + $0x30] sm:$0xff]
  %v28 = vld [vmem:[%s1 + $0x38] sm:$0xff]
  %vm29 = vcmask 261120
  %v31 = vsel %vm29, %v20, 0
  %33 = vmatpush.msra.mxu0 0.0
  %34 = vmatpush.msra.mxu0 0.0
  %35 = vmatpush.msra.mxu0 0.0
  %36 = vmatpush.msra.mxu0 0.0
  %37 = vmatpush.msra.mxu0 0.0
  %38 = vmatpush.msra.mxu0 0.0
  %39 = vmatpush.msra.mxu0 0.0
  %40 = vmatpush.msra.mxu0 0.0
  %41 = vmatpush.msra.mxu0 0.0
  %42 = vmatpush.msra.mxu0 0.0
  %43 = vmatpush.msra.mxu0 0.0
  %44 = vmatpush.msra.mxu0 0.0
  %45 = vmatpush.msra.mxu0 %v27
  %46 = vmatpush.msra.mxu0 %v25
  %47 = vmatpush.msra.mxu0 %v23
  %48 = vmatpush.msra.mxu0 %v21
  %49 = vmatmul.f32.gmra.mxu0 %v31
  %v50 = vpop.f32.mrf.mxu0
  %v51 = vadd.f32 0.0, %v50
  %52 = vdwg.mxu0
  %53 = vmatpush.msra.mxu0 0.0
  %54 = vmatpush.msra.mxu0 0.0
  %55 = vmatpush.msra.mxu0 0.0
  %56 = vmatpush.msra.mxu0 0.0
  %57 = vmatpush.msra.mxu0 0.0
  %58 = vmatpush.msra.mxu0 0.0
  %59 = vmatpush.msra.mxu0 0.0
  %60 = vmatpush.msra.mxu0 0.0
  %61 = vmatpush.msra.mxu0 0.0
  %62 = vmatpush.msra.mxu0 0.0
  %63 = vmatpush.msra.mxu0 0.0
  %64 = vmatpush.msra.mxu0 0.0
  %65 = vmatpush.msra.mxu0 %v28
  %66 = vmatpush.msra.mxu0 %v26
  %67 = vmatpush.msra.mxu0 %v24
  %68 = vmatpush.msra.mxu0 %v22
  %69 = vmatmul.f32.gmra.mxu0 %v31
  %v70 = vpop.f32.mrf.mxu0
  %v71 = vadd.f32 0.0, %v70
  %72 = vdwg.mxu0
  %v73 = vld [vmem:[%s3] sm:$0x1]
  %v75 = vperm.slane %v73, 0
  %v77 = vadd.f32 %v51, %v75
  %v78 = vmax.f32 %v77, 0.0
  %v79 = vld [vmem:[%s2] sm:$0xff]
  %v80 = vld [vmem:[%s2 + $0x8] sm:$0xff]
  %v81 = vld [vmem:[%s2 + $0x10] sm:$0xff]
  %v82 = vld [vmem:[%s2 + $0x18] sm:$0xff]
  %v83 = vld [vmem:[%s2 + $0x20] sm:$0xff]
  %v84 = vld [vmem:[%s2 + $0x28] sm:$0xff]
  %v85 = vld [vmem:[%s2 + $0x30] sm:$0xff]
  %v86 = vld [vmem:[%s2 + $0x38] sm:$0xff]
  %v87 = vld [vmem:[%s2 + $0x40] sm:$0xff]
  %v88 = vld [vmem:[%s2 + $0x48] sm:$0xff]
  %v89 = vld [vmem:[%s2 + $0x50] sm:$0xff]
  %v90 = vld [vmem:[%s2 + $0x58] sm:$0xff]
  %v91 = vld [vmem:[%s2 + $0x60] sm:$0xff]
  %v92 = vld [vmem:[%s2 + $0x68] sm:$0xff]
  %v93 = vld [vmem:[%s2 + $0x70] sm:$0xff]
  %v94 = vld [vmem:[%s2 + $0x78] sm:$0xff]
  %95 = vmatpush.msra.mxu0 %v94
  %96 = vmatpush.msra.mxu0 %v93
  %97 = vmatpush.msra.mxu0 %v92
  %98 = vmatpush.msra.mxu0 %v91
  %99 = vmatpush.msra.mxu0 %v90
  %100 = vmatpush.msra.mxu0 %v89
  %101 = vmatpush.msra.mxu0 %v88
  %102 = vmatpush.msra.mxu0 %v87
  %103 = vmatpush.msra.mxu0 %v86
  %104 = vmatpush.msra.mxu0 %v85
  %105 = vmatpush.msra.mxu0 %v84
  %106 = vmatpush.msra.mxu0 %v83
  %107 = vmatpush.msra.mxu0 %v82
  %108 = vmatpush.msra.mxu0 %v81
  %109 = vmatpush.msra.mxu0 %v80
  %110 = vmatpush.msra.mxu0 %v79
  %111 = vmatmul.f32.gmra.mxu0 %v78
  %v112 = vpop.f32.mrf.mxu0
  %v113 = vadd.f32 %v71, %v112
  %114 = vdwg.mxu0
  %v115 = vld [vmem:[%s4] sm:$0x1]
  %v117 = vperm.slane %v115, 0
  %v119 = vadd.f32 %v113, %v117
  %vm120 = vcmask 31744
  %121 = vst.msk [vmem:[%s5] sm:$0xff] %vm120, %v119
  // Predicated region
  $region22: #{tpu_custom_call.1} parent=0 // pred_check
    _
  $region23: #{tpu_custom_call.1} parent=0 // pred_check_branch
    %123 = sbr.rel (0) target = $region25
  $region24: #{tpu_custom_call.1} parent=0 // pred_region
    _
  $region25: #{tpu_custom_call.1} parent=0 // pred_fallthru
    _
  // Predicated region
  $region26: #{tpu_custom_call.1} parent=0 // pred_check
    _
  $region27: #{tpu_custom_call.1} parent=0 // pred_check_branch
    %125 = sbr.rel (0) target = $region29
  $region28: #{tpu_custom_call.1} parent=0 // pred_region
    _
  $region29: #{tpu_custom_call.1} parent=0 // pred_fallthru
    _

</llo_original>
